<compile_context>
chip_gen: v5e
topology: v5e:2x2
jax: 0.10.0
libtpu: 0.0.40
codegen_flags: <defaults>
</compile_context>

<pallas_src>
import functools

import jax
import jax.numpy as jnp
from jax.experimental import pallas as pl
from jax.experimental.pallas import tpu as pltpu

_LANES = 128
_SUBLANES = 8


def _round_up(x, m):
    return -(-x // m) * m


def _distance_map_kernel(center_ref, out_ref, *, num_bins, bin_disp, width,
                         s_tile, f32_divmod):
    # center_ref: (B, 2) f32 in SMEM (constant block, fetched once).
    b = pl.program_id(0)
    cy = center_ref[b, 0]
    cx = center_ref[b, 1]

    # Flat pixel indices covered by this (s_tile, 128) tile of the padded
    # flattened H*W axis.
    base = pl.program_id(1) * (s_tile * _LANES)
    lin = (base
           + jax.lax.broadcasted_iota(jnp.int32, (s_tile, _LANES), 0) * _LANES
           + jax.lax.broadcasted_iota(jnp.int32, (s_tile, _LANES), 1))

    w = jnp.float32(width)
    if f32_divmod:
        # Exact for lin < 2^24: floor(correctly-rounded lin/W) == lin // W,
        # and lin - row*W is an exact integer-valued f32.
        lin_f = lin.astype(jnp.float32)
        row = jnp.floor(lin_f / w)
        col = lin_f - row * w
    else:
        row_i = lin // width
        row = row_i.astype(jnp.float32)
        col = (lin - row_i * width).astype(jnp.float32)

    # Distance computed once per pixel (single sqrt on the EUP); exact divide
    # by bin_displacement to match the reference.
    d0 = row - cy
    d1 = col - cx
    dist_scaled = jnp.sqrt(d0 * d0 + d1 * d1) / jnp.float32(bin_disp)

    # Unrolled per-bin (s_tile, 128) slab writes (num_bins is static):
    # regular bins relu(1 - |diff|), last bin clamp(1 + diff, 0, 1).
    for k in range(num_bins - 1):
        out_ref[0, k, :, :] = jnp.maximum(
            1.0 - jnp.abs(dist_scaled - jnp.float32(k)), 0.0)
    out_ref[0, num_bins - 1, :, :] = jnp.clip(
        1.0 + dist_scaled - jnp.float32(num_bins - 1), 0.0, 1.0)


def _choose_s_tile(s_rows, batch, num_bins, cap_bytes=4 << 20):
    """Pick the sublane extent of the pixel tile.

    s_rows = ceil(H*W / 128) lane-rows are needed.  The tile is a multiple of
    8 sublanes, keeps the f32 output block under cap_bytes, and (when B == 1)
    guarantees at least 2 grid steps so both v7x TensorCores get work.
    """
    bytes_per_row = num_bins * _LANES * 4
    cap_rows = max(_SUBLANES,
                   (cap_bytes // bytes_per_row) // _SUBLANES * _SUBLANES)
    s_tile = min(cap_rows, _round_up(s_rows, _SUBLANES))
    if batch == 1 and s_tile >= s_rows and s_rows > _SUBLANES:
        s_tile = _round_up(pl.cdiv(s_rows, 2), _SUBLANES)
    return s_tile


def distance_map(center, output_sz, num_bins, bin_displacement=1.0):
    """Pallas equivalent of DistanceMap(num_bins, bin_displacement).forward(center, output_sz)."""
    center = jnp.asarray(center, jnp.float32).reshape(-1, 2)
    B = center.shape[0]
    H, W = int(output_sz[0]), int(output_sz[1])
    HW = H * W
    num_bins = int(num_bins)

    s_rows = pl.cdiv(HW, _LANES)               # lane-rows needed
    s_tile = _choose_s_tile(s_rows, B, num_bins)
    s_pad = _round_up(s_rows, s_tile)          # padded lane-rows
    num_tiles = s_pad // s_tile

    # f32 floor-div path is exact only while every flat index < 2^24.
    f32_divmod = (s_pad * _LANES) <= (1 << 24)

    kernel = functools.partial(
        _distance_map_kernel,
        num_bins=num_bins,
        bin_disp=float(bin_displacement),
        width=W,
        s_tile=s_tile,
        f32_divmod=f32_divmod,
    )

    block_bytes = num_bins * s_tile * _LANES * 4
    cost = pl.CostEstimate(
        flops=(8 + 3 * num_bins) * B * HW,
        transcendentals=B * HW,
        bytes_accessed=B * num_bins * HW * 4 + B * 2 * 4,
    )

    out = pl.pallas_call(
        kernel,
        out_shape=jax.ShapeDtypeStruct((B, num_bins, s_pad, _LANES),
                                       jnp.float32),
        grid=(B, num_tiles),
        in_specs=[pl.BlockSpec((B, 2), lambda b, t: (0, 0),
                               memory_space=pltpu.MemorySpace.SMEM)],
        out_specs=pl.BlockSpec((1, num_bins, s_tile, _LANES),
                               lambda b, t: (b, 0, t, 0)),
        compiler_params=pltpu.CompilerParams(
            dimension_semantics=("parallel", "parallel"),
            # 2x block (double buffer) + temporaries, with generous headroom;
            # well within v7x's 64 MiB physical VMEM.
            vmem_limit_bytes=min(48 << 20, max(16 << 20, 4 * block_bytes))),
        cost_estimate=cost,
    )(center)

    out = out.reshape(B, num_bins, s_pad * _LANES)[:, :, :HW]
    return out.reshape(B, num_bins, H, W)


def _distance_map_ref(center, output_sz, num_bins, bin_displacement=1.0):
    """Pure-JAX reference mirroring the PyTorch module exactly."""
    center = jnp.asarray(center, jnp.float32).reshape(-1, 2)
    bin_centers = jnp.arange(num_bins, dtype=jnp.float32).reshape(1, -1, 1, 1)
    k0 = jnp.arange(output_sz[0], dtype=jnp.float32).reshape(1, 1, -1, 1)
    k1 = jnp.arange(output_sz[1], dtype=jnp.float32).reshape(1, 1, 1, -1)
    d0 = k0 - center[:, 0].reshape(-1, 1, 1, 1)
    d1 = k1 - center[:, 1].reshape(-1, 1, 1, 1)
    dist = jnp.sqrt(d0 * d0 + d1 * d1)
    bin_diff = dist / bin_displacement - bin_centers
    return jnp.concatenate(
        (jnp.maximum(1.0 - jnp.abs(bin_diff[:, :-1, :, :]), 0.0),
         jnp.clip(1.0 + bin_diff[:, -1:, :, :], 0.0, 1.0)),
        axis=1,
    )


if __name__ == "__main__":
    # Module "parameters" (set deterministically in-script).
    NUM_BINS = 4
    BIN_DISPLACEMENT = 0.5

    B, H, W = 2, 16, 16
    key = jax.random.PRNGKey(0)
    # (y, x) centers somewhere inside the (H, W) map.
    center = jax.random.uniform(key, (B, 2), dtype=jnp.float32) * jnp.array(
        [H - 1, W - 1], dtype=jnp.float32)

    out = distance_map(center, (H, W), NUM_BINS, BIN_DISPLACEMENT)
    out = jax.block_until_ready(out)
    ref = _distance_map_ref(center, (H, W), NUM_BINS, BIN_DISPLACEMENT)
    assert out.shape == (B, NUM_BINS, H, W), out.shape
    assert jnp.allclose(out, ref, atol=1e-5, rtol=1e-5), "mismatch vs reference"

    # Second config: B=1 (exercises the >=2-grid-step split path), non-square
    # map, W not a power of two, 3 bins, non-power-of-two displacement
    # (exercises the exact divide).
    B2, H2, W2, NB2, DISP2 = 1, 20, 24, 3, 0.7
    center2 = jax.random.uniform(jax.random.PRNGKey(0), (B2, 2),
                                 dtype=jnp.float32) * jnp.array(
        [H2 - 1, W2 - 1], dtype=jnp.float32)
    out2 = jax.block_until_ready(distance_map(center2, (H2, W2), NB2, DISP2))
    ref2 = _distance_map_ref(center2, (H2, W2), NB2, DISP2)
    assert out2.shape == (B2, NB2, H2, W2), out2.shape
    assert jnp.allclose(out2, ref2, atol=1e-5, rtol=1e-5), \
        "mismatch vs reference (cfg2)"

    print("KERNEL_OK")
</pallas_src>

<mosaic_0001>
module attributes {stable_mosaic.version = 11 : i64} {
  func.func @_distance_map_kernel(%arg0: i32, %arg1: i32, %arg2: memref<2x2xf32, #tpu.memory_space<smem>>, %arg3: memref<1x4x8x128xf32, #tpu.memory_space<vmem>>) attributes {dimension_semantics = [#tpu.dimension_semantics<parallel>, #tpu.dimension_semantics<parallel>], iteration_bounds = array<i64: 2, 1>, scalar_prefetch = 0 : i64, scratch_operands = 0 : i64, tpu.core_type = #tpu.core_type<tc>, window_params = [{transform_indices = @transform_0, window_bounds = array<i64: 2, 2>}, {transform_indices = @transform_1, window_bounds = array<i64: 1, 4, 8, 128>}]} {
    %0 = arith.index_cast %arg0 : i32 to index
    %c0 = arith.constant 0 : index
    %1 = memref.load %arg2[%0, %c0] : memref<2x2xf32, #tpu.memory_space<smem>>
    %2 = arith.index_cast %arg0 : i32 to index
    %c1 = arith.constant 1 : index
    %3 = memref.load %arg2[%2, %c1] : memref<2x2xf32, #tpu.memory_space<smem>>
    %c1024_i32 = arith.constant 1024 : i32
    %4 = arith.muli %arg1, %c1024_i32 : i32
    %5 = tpu.iota {dimensions = array<i32: 0>} : vector<8x128xi32>
    %c128_i32 = arith.constant 128 : i32
    %6 = vector.broadcast %c128_i32 : i32 to vector<8x128xi32>
    %7 = arith.muli %5, %6 : vector<8x128xi32>
    %8 = vector.broadcast %4 : i32 to vector<8x128xi32>
    %9 = arith.addi %8, %7 : vector<8x128xi32>
    %10 = tpu.iota {dimensions = array<i32: 1>} : vector<8x128xi32>
    %11 = arith.addi %9, %10 : vector<8x128xi32>
    %12 = arith.sitofp %11 : vector<8x128xi32> to vector<8x128xf32>
    %cst = arith.constant 1.600000e+01 : f32
    %13 = vector.broadcast %cst : f32 to vector<8x128xf32>
    %14 = arith.divf %12, %13 : vector<8x128xf32>
    %15 = math.floor %14 : vector<8x128xf32>
    %cst_0 = arith.constant 1.600000e+01 : f32
    %16 = vector.broadcast %cst_0 : f32 to vector<8x128xf32>
    %17 = arith.mulf %15, %16 : vector<8x128xf32>
    %18 = arith.subf %12, %17 : vector<8x128xf32>
    %19 = vector.broadcast %1 : f32 to vector<8x128xf32>
    %20 = arith.subf %15, %19 : vector<8x128xf32>
    %21 = vector.broadcast %3 : f32 to vector<8x128xf32>
    %22 = arith.subf %18, %21 : vector<8x128xf32>
    %23 = arith.mulf %20, %20 : vector<8x128xf32>
    %24 = arith.mulf %22, %22 : vector<8x128xf32>
    %25 = arith.addf %23, %24 : vector<8x128xf32>
    %26 = math.sqrt %25 : vector<8x128xf32>
    %cst_1 = arith.constant 5.000000e-01 : f32
    %27 = vector.broadcast %cst_1 : f32 to vector<8x128xf32>
    %28 = arith.divf %26, %27 : vector<8x128xf32>
    %cst_2 = arith.constant 0.000000e+00 : f32
    %29 = vector.broadcast %cst_2 : f32 to vector<8x128xf32>
    %30 = arith.subf %28, %29 : vector<8x128xf32>
    %31 = math.absf %30 : vector<8x128xf32>
    %cst_3 = arith.constant 1.000000e+00 : f32
    %32 = vector.broadcast %cst_3 : f32 to vector<8x128xf32>
    %33 = arith.subf %32, %31 : vector<8x128xf32>
    %cst_4 = arith.constant 0.000000e+00 : f32
    %34 = vector.broadcast %cst_4 : f32 to vector<8x128xf32>
    %35 = arith.maximumf %33, %34 : vector<8x128xf32>
    %c0_5 = arith.constant 0 : index
    %c0_6 = arith.constant 0 : index
    %c0_7 = arith.constant 0 : index
    %c0_8 = arith.constant 0 : index
    %36 = vector.load %arg3[%c0_5, %c0_6, %c0_7, %c0_8] : memref<1x4x8x128xf32, #tpu.memory_space<vmem>>, vector<1x1x8x128xf32>
    %37 = vector.shape_cast %36 : vector<1x1x8x128xf32> to vector<8x128xf32>
    %38 = vector.shape_cast %35 : vector<8x128xf32> to vector<1x1x8x128xf32>
    tpu.vector_store %arg3[%c0_5, %c0_6, %c0_7, %c0_8], %38 {strides = array<i32>} : memref<1x4x8x128xf32, #tpu.memory_space<vmem>>, vector<1x1x8x128xf32>,
    %cst_9 = arith.constant 1.000000e+00 : f32
    %39 = vector.broadcast %cst_9 : f32 to vector<8x128xf32>
    %40 = arith.subf %28, %39 : vector<8x128xf32>
    %41 = math.absf %40 : vector<8x128xf32>
    %cst_10 = arith.constant 1.000000e+00 : f32
    %42 = vector.broadcast %cst_10 : f32 to vector<8x128xf32>
    %43 = arith.subf %42, %41 : vector<8x128xf32>
    %cst_11 = arith.constant 0.000000e+00 : f32
    %44 = vector.broadcast %cst_11 : f32 to vector<8x128xf32>
    %45 = arith.maximumf %43, %44 : vector<8x128xf32>
    %c0_12 = arith.constant 0 : index
    %c1_13 = arith.constant 1 : index
    %c0_14 = arith.constant 0 : index
    %c0_15 = arith.constant 0 : index
    %46 = vector.load %arg3[%c0_12, %c1_13, %c0_14, %c0_15] : memref<1x4x8x128xf32, #tpu.memory_space<vmem>>, vector<1x1x8x128xf32>
    %47 = vector.shape_cast %46 : vector<1x1x8x128xf32> to vector<8x128xf32>
    %48 = vector.shape_cast %45 : vector<8x128xf32> to vector<1x1x8x128xf32>
    tpu.vector_store %arg3[%c0_12, %c1_13, %c0_14, %c0_15], %48 {strides = array<i32>} : memref<1x4x8x128xf32, #tpu.memory_space<vmem>>, vector<1x1x8x128xf32>,
    %cst_16 = arith.constant 2.000000e+00 : f32
    %49 = vector.broadcast %cst_16 : f32 to vector<8x128xf32>
    %50 = arith.subf %28, %49 : vector<8x128xf32>
    %51 = math.absf %50 : vector<8x128xf32>
    %cst_17 = arith.constant 1.000000e+00 : f32
    %52 = vector.broadcast %cst_17 : f32 to vector<8x128xf32>
    %53 = arith.subf %52, %51 : vector<8x128xf32>
    %cst_18 = arith.constant 0.000000e+00 : f32
    %54 = vector.broadcast %cst_18 : f32 to vector<8x128xf32>
    %55 = arith.maximumf %53, %54 : vector<8x128xf32>
    %c0_19 = arith.constant 0 : index
    %c2 = arith.constant 2 : index
    %c0_20 = arith.constant 0 : index
    %c0_21 = arith.constant 0 : index
    %56 = vector.load %arg3[%c0_19, %c2, %c0_20, %c0_21] : memref<1x4x8x128xf32, #tpu.memory_space<vmem>>, vector<1x1x8x128xf32>
    %57 = vector.shape_cast %56 : vector<1x1x8x128xf32> to vector<8x128xf32>
    %58 = vector.shape_cast %55 : vector<8x128xf32> to vector<1x1x8x128xf32>
    tpu.vector_store %arg3[%c0_19, %c2, %c0_20, %c0_21], %58 {strides = array<i32>} : memref<1x4x8x128xf32, #tpu.memory_space<vmem>>, vector<1x1x8x128xf32>,
    %cst_22 = arith.constant 1.000000e+00 : f32
    %59 = vector.broadcast %cst_22 : f32 to vector<8x128xf32>
    %60 = arith.addf %59, %28 : vector<8x128xf32>
    %cst_23 = arith.constant 3.000000e+00 : f32
    %61 = vector.broadcast %cst_23 : f32 to vector<8x128xf32>
    %62 = arith.subf %60, %61 : vector<8x128xf32>
    %cst_24 = arith.constant 0.000000e+00 : f32
    %cst_25 = arith.constant 1.000000e+00 : f32
    %63 = vector.broadcast %cst_24 : f32 to vector<8x128xf32>
    %64 = arith.maximumf %63, %62 : vector<8x128xf32>
    %65 = vector.broadcast %cst_25 : f32 to vector<8x128xf32>
    %66 = arith.minimumf %65, %64 : vector<8x128xf32>
    %c0_26 = arith.constant 0 : index
    %c3 = arith.constant 3 : index
    %c0_27 = arith.constant 0 : index
    %c0_28 = arith.constant 0 : index
    %67 = vector.load %arg3[%c0_26, %c3, %c0_27, %c0_28] : memref<1x4x8x128xf32, #tpu.memory_space<vmem>>, vector<1x1x8x128xf32>
    %68 = vector.shape_cast %67 : vector<1x1x8x128xf32> to vector<8x128xf32>
    %69 = vector.shape_cast %66 : vector<8x128xf32> to vector<1x1x8x128xf32>
    tpu.vector_store %arg3[%c0_26, %c3, %c0_27, %c0_28], %69 {strides = array<i32>} : memref<1x4x8x128xf32, #tpu.memory_space<vmem>>, vector<1x1x8x128xf32>,
    return
  }
  func.func @transform_0(%arg0: i32, %arg1: i32) -> (i32, i32) {
    %c0_i32 = arith.constant 0 : i32
    %c0_i32_0 = arith.constant 0 : i32
    %c0_i32_1 = arith.constant 0 : i32
    return %c0_i32, %c0_i32_0 : i32, i32
  }
  func.func @transform_1(%arg0: i32, %arg1: i32) -> (i32, i32, i32, i32) {
    %c0_i32 = arith.constant 0 : i32
    %c0_i32_0 = arith.constant 0 : i32
    %c0_i32_1 = arith.constant 0 : i32
    return %arg0, %c0_i32, %arg1, %c0_i32_0 : i32, i32, i32, i32
  }
}

</mosaic_0001>

<llo_original>
// kernel: tpu_custom_call.1
$region0: #{tpu_custom_call.1}
  #allocation0 [shape = 'u32[]', space=smem, size = 0x4, offset = 0x4, fixed_abs, tag = 'smem constant byte address 0x4 - core index']
  #allocation1 [shape = 'u32[72,128]{1,0:T(1,128)}', space=vmem, size = 0x9000, scoped, tag = 'internal scratch']
  %s0 = inlined_call_operand.hbm [shape: f32[2,2], index: 0, kind: input, shape index: {}]
  %s1 = inlined_call_operand.hbm [shape: f32[2,4,8,128], index: 1, kind: output, shape index: {}]
  %s2 = sld [smem:[#allocation0]]
  $region41: #{tpu_custom_call.1} parent=0
    _
  %s4 = ssub.s32 1, %s2
  %s5 = scalar_select 0, %s4, %s2
  $region1: #{tpu_custom_call.1} parent=0
    #allocation2 [shape = 'u8[1024]{0}', space=smem, size = 0x400, scoped, tag = 'input window, operand 0, single buffered']
    #allocation3 [shape = 's32[2]{0}', space=sflag, size = 0x8, scoped, tag = 'scoped memory for tpu_custom_call.1']
    #allocation4 [shape = 's32[2]{0}', space=sflag, size = 0x8, scoped, tag = 'scoped memory for tpu_custom_call.1']
    #allocation5 [shape = 'u8[32768]{0}', space=vmem, size = 0x8000, scoped, tag = 'output window, operand 0']
    %6 = vsyncpa [#allocation4], 0
    %7 = vsyncpa [#allocation3], 0
    %s8 = scalar_lea.sflag [#allocation3], 1
    %9 = vsyncpa %s8, 0
    loop: start=0, step=1, limit=4
    $region2: #{tpu_custom_call.1} parent=1 // loop_pre_header
      _
    $region3: #{tpu_custom_call.1} parent=1 // loop_header
      %s11 = sphi 0, %s15
      %p12 = scmp.ge.s32.totalorder %s11, 4
      %s18 = sphi 0, %s30
      %s19 = sphi 0, %s26
      %s20 = sphi 0, %s18
      %s21 = sphi 0, %s19
      %s22 = sphi 0, %s20
      %s23 = sphi 0, %s21
      %s31 = sphi 0, %s31
      %s33 = sphi 0, %s31
      %s34 = sphi 0, %s33
      %s48 = sphi 0, %s34
      %s56 = sphi 0, %s58
      %s59 = sphi 0, %s56
      %s60 = sphi 0, %s59
      %s76 = sphi 0, %s60
    $region4: #{tpu_custom_call.1} parent=1 // loop_header_branch
      %14 = sbr.rel (%p12) target = $region8
    $region5: #{tpu_custom_call.1} parent=1 // loop_body
      %s16 = ssub.s32 %s11, 1
      %s17 = ssub.s32 %s11, 2
      %s24 = sadd.s32 1, %s19
      %p25 = scmp.ge.s32.totalorder %s24, 1
      %s26 = scalar_select %p25, 0, %s24
      %s27 = sadd.s32 1, %s18
      %s28 = scalar_select %p25, %s27, %s18
      %p29 = scmp.ge.s32.totalorder %s28, 2
      %s30 = scalar_select %p29, 0, %s28
      %s32 = sadd.s32 %s31, 1
      %p35 = scmp.eq.s32.totalorder %s11, 1
      %p36 = scmp.ne.s32.totalorder %s31, %s33
      %p37 = scmp.eq.s32.totalorder %s11, 0
      %p38 = por %p36, %p37
      %p39 = scmp.ne.s32.totalorder %s31, %s33
      %p40 = scmp.eq.s32.totalorder %s16, 1
      %p41 = por %p39, %p40
      %p42 = scmp.ne.s32.totalorder %s33, %s34
      %p43 = scmp.eq.s32.totalorder %s16, 0
      %p44 = por %p42, %p43
      %p45 = scmp.ne.s32.totalorder %s33, %s34
      %p46 = scmp.eq.s32.totalorder %s17, 1
      %p47 = por %p45, %p46
      %p49 = scmp.ne.s32.totalorder %s34, %s48
      %p50 = scmp.eq.s32.totalorder %s17, 0
      %p51 = por %p49, %p50
      %s52 = ssub.s32 %s18, %s30
      %s53 = ssub.s32 %s19, %s26
      %s54 = sor.u32 %s52, %s53
      %p55 = scmp.eq.s32.totalorder %s54, 0
      %s57 = sadd.s32 %s56, 1
      %s58 = scalar_select %p55, %s56, %s57
      %p61 = pneg %p55
      %p62 = scmp.eq.s32.totalorder %s11, 1
      %p63 = por %p61, %p62
      %p64 = scmp.ne.s32.totalorder %s56, %s59
      %p65 = scmp.eq.s32.totalorder %s11, 0
      %p66 = por %p64, %p65
      %p67 = scmp.ne.s32.totalorder %s56, %s59
      %p68 = scmp.eq.s32.totalorder %s16, 1
      %p69 = por %p67, %p68
      %p70 = scmp.ne.s32.totalorder %s59, %s60
      %p71 = scmp.eq.s32.totalorder %s16, 0
      %p72 = por %p70, %p71
      %p73 = scmp.ne.s32.totalorder %s59, %s60
      %p74 = scmp.eq.s32.totalorder %s17, 1
      %p75 = por %p73, %p74
      %p77 = scmp.ne.s32.totalorder %s60, %s76
      %p78 = scmp.eq.s32.totalorder %s17, 0
      %p79 = por %p77, %p78
      %p80 = scmp.le.s32.totalorder 1, %s11
      %p81 = scmp.lt.s32.totalorder %s11, 3
      %p82 = pnand %p80, %p81
      %p83 = pneg %p82
      // Predicated region
      $region9: #{tpu_custom_call.1} parent=5 // pred_check
        _
      $region10: #{tpu_custom_call.1} parent=5 // pred_check_branch
        %85 = sbr.rel (%p82) target = $region12
      $region11: #{tpu_custom_call.1} parent=5 // pred_region
        %s86 = ssub.s32 %s11, 1
        // Predicated region
        $region13: #{tpu_custom_call.1} parent=11 // pred_check
          %p87 = pneg %p44
        $region14: #{tpu_custom_call.1} parent=11 // pred_check_branch
          %89 = sbr.rel (%p87) target = $region16
        $region15: #{tpu_custom_call.1} parent=11 // pred_region
          %91 = vsyncadd [#allocation4], 0
          %s93 = sshll.u32 %s0, 4
          %s94 = int_to_ptr.hbm [resolvable:$true] %s93
          %96 = dma.hbm_to_smem %s94, 32, [#allocation2], [#allocation4]
        $region16: #{tpu_custom_call.1} parent=11 // pred_fallthru
          _
      $region12: #{tpu_custom_call.1} parent=5 // pred_fallthru
        _
      %p97 = scmp.lt.s32.totalorder %s11, 2
      // Predicated region
      $region17: #{tpu_custom_call.1} parent=5 // pred_check
        %p98 = pneg %p97
      $region18: #{tpu_custom_call.1} parent=5 // pred_check_branch
        %100 = sbr.rel (%p98) target = $region20
      $region19: #{tpu_custom_call.1} parent=5 // pred_region
        _
      $region20: #{tpu_custom_call.1} parent=5 // pred_fallthru
        _
      %p101 = scmp.le.s32.totalorder 1, %s11
      %p102 = scmp.lt.s32.totalorder %s11, 3
      %p103 = pnand %p101, %p102
      %p104 = pneg %p103
      // Predicated region
      $region21: #{tpu_custom_call.1} parent=5 // pred_check
        _
      $region22: #{tpu_custom_call.1} parent=5 // pred_check_branch
        %106 = sbr.rel (%p103) target = $region24
      $region23: #{tpu_custom_call.1} parent=5 // pred_region
        %s107 = ssub.s32 %s11, 1
        // Predicated region
        $region25: #{tpu_custom_call.1} parent=23 // pred_check
          %p108 = pneg %p44
        $region26: #{tpu_custom_call.1} parent=23 // pred_check_branch
          %110 = sbr.rel (%p108) target = $region28
        $region27: #{tpu_custom_call.1} parent=23 // pred_region
          %112 = dma.done [#allocation4], 32
        $region28: #{tpu_custom_call.1} parent=23 // pred_fallthru
          _
        %113 = sfence
        %p114 = pneg %p44
        %p115 = pneg %p41
        %p116 = pneg %p72
        %p117 = pneg %p69
        %s118 = sand.u32 %s59, 1
        %s119 = scalar_lea.sflag [#allocation3], %s118
        %s120 = sand.u32 %s59, 1
        %s121 = smul.addr %s120, 32
        %s122 = scalar_lea.vmem [#allocation5], %s121
        %s123 = smul.u32 %s20, 128
        %s124 = sld [smem:[#allocation2 + %s123]]
        %s125 = sadd.s32 %s123, 1
        %s126 = sld [smem:[#allocation2 + %s125]]
        %s127 = smul.u32 %s21, 1024
        %v128 = vlaneseq
        %v129 = vshrl.u32 %v128, 7
        %v130 = vmul.u32 %v129, 128
        %v131 = vstv %s127
        %v132 = vadd.s32 %v131, %v130
        %v133 = vlaneseq
        %v134 = vand.u32 %v133, 127
        %v135 = vadd.s32 %v132, %v134
        %v136 = vcvt.s32.f32 %v135
        %v137 = vrcp.pop 16.0
        %v138 = vmul.f32 16.0, %v137
        %v139 = vsub.f32 1.0, %v138
        %v140 = vmul.f32 %v137, %v139
        %v141 = vadd.f32 %v137, %v140
        %vm142 = vweird.f32 %v137
        %v143 = vsel %vm142, %v137, %v141
        %v144 = vmul.f32 %v136, %v143
        %v145 = vfloor.f32 %v144
        %v146 = vmul.f32 %v145, 16.0
        %v147 = vsub.f32 %v136, %v146
        %v148 = vstv %s124
        %v149 = vsub.f32 %v145, %v148
        %v150 = vstv %s126
        %v151 = vsub.f32 %v147, %v150
        %v152 = vmul.f32 %v149, %v149
        %v153 = vmul.f32 %v151, %v151
        %v154 = vadd.f32 %v152, %v153
        %v155 = vrsqrt.pop %v154
        %v156 = vmul.f32 %v155, %v154
        %v157 = vmul.f32 %v156, %v155
        %v158 = vmul.f32 0.5, %v157
        %v159 = vsub.f32 1.5, %v158
        %v160 = vmul.f32 %v155, %v159
        %v161 = vmul.f32 %v154, %v160
        %vm162 = vcmp.eq.f32.partialorder %v154, inf
        %v163 = vsel %vm162, %v154, %v161
        %vm164 = vcmp.eq.f32.partialorder %v154, 0.0
        %v165 = vand.u32 %v154, 2147483648
        %v166 = vsel %vm164, %v165, %v163
        %v167 = vrcp.pop 0.5
        %v168 = vmul.f32 0.5, %v167
        %v169 = vsub.f32 1.0, %v168
        %v170 = vmul.f32 %v167, %v169
        %v171 = vadd.f32 %v167, %v170
        %vm172 = vweird.f32 %v167
        %v173 = vsel %vm172, %v167, %v171
        %v174 = vmul.f32 %v166, %v173
        %v175 = vand.u32 2147483647, %v174
        %v176 = vsub.f32 1.0, %v175
        %v177 = vmax.f32 %v176, 0.0
        %178 = vst [vmem:[%s122] sm:$0xff] %v177
        %v179 = vsub.f32 %v174, 1.0
        %v180 = vand.u32 2147483647, %v179
        %v181 = vsub.f32 1.0, %v180
        %v182 = vmax.f32 %v181, 0.0
        %s183 = scalar_lea.vmem %s122, 8 [#allocation5]
        %184 = vst [vmem:[%s183] sm:$0xff] %v182
        %v185 = vsub.f32 %v174, 2.0
        %v186 = vand.u32 2147483647, %v185
        %v187 = vsub.f32 1.0, %v186
        %v188 = vmax.f32 %v187, 0.0
        %s189 = scalar_lea.vmem %s122, 16 [#allocation5]
        %190 = vst [vmem:[%s189] sm:$0xff] %v188
        %v191 = vadd.f32 %v174, 1.0
        %v192 = vsub.f32 %v191, 3.0
        %v193 = vmax.f32 %v192, 0.0
        %v194 = vmin.f32 %v193, 1.0
        %s195 = scalar_lea.vmem %s122, 24 [#allocation5]
        %196 = vst [vmem:[%s195] sm:$0xff] %v194
        %s197 = sand.u32 %s59, 1
        %s198 = scalar_lea.sflag [#allocation3], %s197
        %s199 = sand.u32 %s59, 1
        %s200 = smul.addr %s199, 32
        %s201 = scalar_lea.vmem [#allocation5], %s200
        // Predicated region
        $region29: #{tpu_custom_call.1} parent=23 // pred_check
          %p202 = pneg %p69
        $region30: #{tpu_custom_call.1} parent=23 // pred_check_branch
          %204 = sbr.rel (%p202) target = $region32
        $region31: #{tpu_custom_call.1} parent=23 // pred_region
          %206 = vsyncadd %s198, 0
          %s207 = smul.addr %s20, 4
          %s208 = sadd.s32 %s21, %s207
          %s209 = smul.addr %s208, 8
          %s210 = scalar_lea.hbm %s1, %s209
          %s211 = sshll.u32 %s201, 4
          %s212 = int_to_ptr.vmem [resolvable:$true] %s211
          %s213 = sshll.u32 %s210, 4
          %s214 = int_to_ptr.hbm [resolvable:$true] %s213
          %219 = dma.vmem_to_hbm [thread:$0]  %s212, 512, %s214, %s198, 128, 128, 8
        $region32: #{tpu_custom_call.1} parent=23 // pred_fallthru
          _
      $region24: #{tpu_custom_call.1} parent=5 // pred_fallthru
        _
      %p220 = scmp.le.s32.totalorder 2, %s11
      // Predicated region
      $region33: #{tpu_custom_call.1} parent=5 // pred_check
        %p221 = pneg %p220
      $region34: #{tpu_custom_call.1} parent=5 // pred_check_branch
        %223 = sbr.rel (%p221) target = $region36
      $region35: #{tpu_custom_call.1} parent=5 // pred_region
        %s224 = ssub.s32 %s11, 2
        // Predicated region
        $region37: #{tpu_custom_call.1} parent=35 // pred_check
          %p225 = pneg %p75
        $region38: #{tpu_custom_call.1} parent=35 // pred_check_branch
          %227 = sbr.rel (%p225) target = $region40
        $region39: #{tpu_custom_call.1} parent=35 // pred_region
          %s228 = sand.u32 %s60, 1
          %s229 = scalar_lea.sflag [#allocation3], %s228
          %s230 = sand.u32 %s60, 1
          %s231 = smul.addr %s230, 32
          %s232 = scalar_lea.vmem [#allocation5], %s231
          %234 = dma.done %s229, 512
        $region40: #{tpu_custom_call.1} parent=35 // pred_fallthru
          _
      $region36: #{tpu_custom_call.1} parent=5 // pred_fallthru
        _
    $region6: #{tpu_custom_call.1} parent=1 // loop_footer
      %s15 = sadd.s32 1, %s11
    $region7: #{tpu_custom_call.1} parent=1 // loop_footer_branch
      %10 = sbr.rel target = $region3
    $region8: #{tpu_custom_call.1} parent=1 // loop_exit
      _
    %235 = vsyncpa [#allocation3], 1
    %s236 = scalar_lea.sflag [#allocation3], 1
    %237 = vsyncpa %s236, 1
    %238 = vsyncpa [#allocation4], 1
    %s239 = scalar_lea.sflag [#allocation4], 1
    %240 = vsyncpa %s239, 1

</llo_original>
